<compile_context>
chip_gen: v7x
topology: tpu7x:2x2x1
jax: 0.10.0
libtpu: 0.0.40
codegen_flags: <defaults>
</compile_context>

<pallas_src>
import jax
import jax.numpy as jnp
from jax.experimental import pallas as pl
from jax.experimental.pallas import tpu as pltpu


def _lstm_encoder_kernel(x_ref, m_ref, wih_ref, whh_ref, b_ref,
                         out_ref, hn_ref, cn_ref, h_scr, c_scr):
    """One timestep of the masked LSTM recurrence for one batch block.

    x_ref  : (1, BB, Din) input tile for timestep t
    m_ref  : (1, BB, 1)   float mask tile for timestep t
    wih_ref: (Din, 4H)    input->gates weights   (VMEM resident)
    whh_ref: (H,   4H)    hidden->gates weights  (VMEM resident)
    b_ref  : (1,   4H)    combined bias b_ih+b_hh (VMEM resident)
    out_ref: (1, BB, H)   per-timestep output tile
    hn_ref : (BB, H)      final hidden state (written on last step)
    cn_ref : (BB, H)      final cell state   (written on last step)
    h_scr, c_scr : (BB, H) f32 carried recurrence state (VMEM scratch)
    """
    t = pl.program_id(1)

    @pl.when(t == 0)
    def _():
        h_scr[...] = jnp.zeros_like(h_scr)
        c_scr[...] = jnp.zeros_like(c_scr)

    hdim = h_scr.shape[-1]

    x_t = x_ref[0].astype(jnp.float32)      # (BB, Din)
    m_t = m_ref[0]                          # (BB, 1) float32
    h_prev = h_scr[...]
    c_prev = c_scr[...]

    # PyTorch LSTM gate order along the 4H axis: i, f, g, o.
    gates = (jnp.dot(x_t, wih_ref[...], preferred_element_type=jnp.float32)
             + jnp.dot(h_prev, whh_ref[...], preferred_element_type=jnp.float32)
             + b_ref[...])                  # (BB, 4H)

    i_g = jax.nn.sigmoid(gates[:, 0 * hdim:1 * hdim])
    f_g = jax.nn.sigmoid(gates[:, 1 * hdim:2 * hdim])
    g_g = jnp.tanh(gates[:, 2 * hdim:3 * hdim])
    o_g = jax.nn.sigmoid(gates[:, 3 * hdim:4 * hdim])

    c_new = f_g * c_prev + i_g * g_g
    h_new = o_g * jnp.tanh(c_new)

    # Masked state update == pack_padded_sequence semantics.
    c_scr[...] = m_t * c_new + (1.0 - m_t) * c_prev
    h_scr[...] = m_t * h_new + (1.0 - m_t) * h_prev

    # Padded positions produce exact zeros (== pad_packed padding_value=0).
    out_ref[0] = (m_t * h_new).astype(out_ref.dtype)

    @pl.when(t == pl.num_programs(1) - 1)
    def _():
        hn_ref[...] = h_scr[...].astype(hn_ref.dtype)
        cn_ref[...] = c_scr[...].astype(cn_ref.dtype)


def _pick_batch_block(batch: int) -> int:
    # Full batch per block when small; otherwise a multiple-of-8 divisor so the
    # sublane dim stays dense and batch blocks can run "parallel" across TCs.
    if batch <= 256:
        return batch
    for cand in (256, 128, 64, 32, 16, 8):
        if batch % cand == 0:
            return cand
    return batch


def encoder_forward(x, mask, w_ih, w_hh, b_ih, b_hh):
    """Masked single-layer LSTM encoder.

    x    : (B, S, Din) float
    mask : (B, S)      0/1 length mask (1 = valid token, prefix-style)
    w_ih : (4H, Din), w_hh : (4H, H), b_ih/b_hh : (4H,)  -- PyTorch LSTM layout

    Returns (output, [h_n, c_n]); output (B, S, H), states (1, B, H) — matching
    Encoder.forward of the reference module (up to trailing zero padding to S).
    """
    B, S, d_in = x.shape
    h4 = w_ih.shape[0]
    H = h4 // 4

    bb = _pick_batch_block(B)
    nb = B // bb

    # Host-side layout plumbing: time-major activations so each grid step reads
    # one dense (BB, Din) tile; mask broadcast-ready as (S, B, 1) f32.
    x_tm = jnp.transpose(x, (1, 0, 2)).astype(jnp.float32)              # (S, B, Din)
    m_tm = jnp.transpose(mask, (1, 0)).astype(jnp.float32)[..., None]   # (S, B, 1)
    wih_t = jnp.transpose(w_ih).astype(jnp.float32)                     # (Din, 4H)
    whh_t = jnp.transpose(w_hh).astype(jnp.float32)                     # (H,   4H)
    bias = (b_ih + b_hh).astype(jnp.float32).reshape(1, 4 * H)          # (1,   4H)

    grid_spec = pltpu.PrefetchScalarGridSpec(
        num_scalar_prefetch=0,
        grid=(nb, S),                                  # (batch blocks, time)
        in_specs=[
            pl.BlockSpec((1, bb, d_in), lambda b, t: (t, b, 0)),   # x_t tile
            pl.BlockSpec((1, bb, 1),    lambda b, t: (t, b, 0)),   # mask_t tile
            pl.BlockSpec((d_in, 4 * H), lambda b, t: (0, 0)),      # W_ih (resident)
            pl.BlockSpec((H, 4 * H),    lambda b, t: (0, 0)),      # W_hh (resident)
            pl.BlockSpec((1, 4 * H),    lambda b, t: (0, 0)),      # bias (resident)
        ],
        out_specs=[
            pl.BlockSpec((1, bb, H), lambda b, t: (t, b, 0)),      # output
            pl.BlockSpec((bb, H),    lambda b, t: (b, 0)),         # h_n
            pl.BlockSpec((bb, H),    lambda b, t: (b, 0)),         # c_n
        ],
        scratch_shapes=[
            pltpu.VMEM((bb, H), jnp.float32),   # h carry
            pltpu.VMEM((bb, H), jnp.float32),   # c carry
        ],
    )

    out_tm, h_n, c_n = pl.pallas_call(
        _lstm_encoder_kernel,
        out_shape=[
            jax.ShapeDtypeStruct((S, B, H), x.dtype),
            jax.ShapeDtypeStruct((B, H), jnp.float32),
            jax.ShapeDtypeStruct((B, H), jnp.float32),
        ],
        grid_spec=grid_spec,
        compiler_params=pltpu.CompilerParams(
            dimension_semantics=("parallel", "arbitrary"),
            vmem_limit_bytes=64 * 1024 * 1024,   # safe on v5e/v6e (128 MiB) and v7x (64 MiB)
        ),
    )(x_tm, m_tm, wih_t, whh_t, bias)

    output = jnp.transpose(out_tm, (1, 0, 2))            # (B, S, H)
    return output, [h_n[None, :, :], c_n[None, :, :]]    # states: (1, B, H) each


if __name__ == "__main__":
    # Small deterministic example consistent with the module's forward.
    B, S, D_IN, H = 2, 8, 32, 32

    key = jax.random.PRNGKey(0)
    k_x, k_wih, k_whh, k_bih, k_bhh = jax.random.split(key, 5)

    x = jax.random.normal(k_x, (B, S, D_IN), dtype=jnp.float32)
    lengths = jnp.array([6, 4], dtype=jnp.int32)
    mask = (jnp.arange(S)[None, :] < lengths[:, None]).astype(jnp.int32)

    scale = 1.0 / float(jnp.sqrt(jnp.float32(H)))
    w_ih = jax.random.uniform(k_wih, (4 * H, D_IN), minval=-scale, maxval=scale, dtype=jnp.float32)
    w_hh = jax.random.uniform(k_whh, (4 * H, H), minval=-scale, maxval=scale, dtype=jnp.float32)
    b_ih = jax.random.uniform(k_bih, (4 * H,), minval=-scale, maxval=scale, dtype=jnp.float32)
    b_hh = jax.random.uniform(k_bhh, (4 * H,), minval=-scale, maxval=scale, dtype=jnp.float32)

    output, states = encoder_forward(x, mask, w_ih, w_hh, b_ih, b_hh)
    output = jax.block_until_ready(output)
    h_n, c_n = states

    # Pure-JAX reference of the masked-LSTM (== packed LSTM) semantics.
    def ref_lstm(x, mask, w_ih, w_hh, b_ih, b_hh, hdim):
        wih_t, whh_t, bias = w_ih.T, w_hh.T, b_ih + b_hh
        h = jnp.zeros((x.shape[0], hdim), jnp.float32)
        c = jnp.zeros((x.shape[0], hdim), jnp.float32)
        outs = []
        for t in range(x.shape[1]):
            m = mask[:, t:t + 1].astype(jnp.float32)
            g = x[:, t] @ wih_t + h @ whh_t + bias
            i = jax.nn.sigmoid(g[:, :hdim])
            f = jax.nn.sigmoid(g[:, hdim:2 * hdim])
            gg = jnp.tanh(g[:, 2 * hdim:3 * hdim])
            o = jax.nn.sigmoid(g[:, 3 * hdim:])
            c_new = f * c + i * gg
            h_new = o * jnp.tanh(c_new)
            c = m * c_new + (1.0 - m) * c
            h = m * h_new + (1.0 - m) * h
            outs.append(m * h_new)
        return jnp.stack(outs, axis=1), h, c

    ref_out, ref_h, ref_c = ref_lstm(x, mask, w_ih, w_hh, b_ih, b_hh, H)

    assert output.shape == (B, S, H)
    assert h_n.shape == (1, B, H) and c_n.shape == (1, B, H)
    assert jnp.allclose(output, ref_out, atol=1e-4, rtol=1e-4), "output mismatch"
    assert jnp.allclose(h_n[0], ref_h, atol=1e-4, rtol=1e-4), "h_n mismatch"
    assert jnp.allclose(c_n[0], ref_c, atol=1e-4, rtol=1e-4), "c_n mismatch"

    print("KERNEL_OK")
</pallas_src>

<mosaic_0001>
module attributes {stable_mosaic.version = 11 : i64} {
  func.func @_lstm_encoder_kernel(%arg0: i32, %arg1: i32, %arg2: memref<1x2x32xf32, #tpu.memory_space<vmem>>, %arg3: memref<1x2x1xf32, #tpu.memory_space<vmem>>, %arg4: memref<32x128xf32, #tpu.memory_space<vmem>>, %arg5: memref<32x128xf32, #tpu.memory_space<vmem>>, %arg6: memref<1x128xf32, #tpu.memory_space<vmem>>, %arg7: memref<1x2x32xf32, #tpu.memory_space<vmem>>, %arg8: memref<2x32xf32, #tpu.memory_space<vmem>>, %arg9: memref<2x32xf32, #tpu.memory_space<vmem>>, %arg10: memref<2x32xf32, #tpu.memory_space<vmem>>, %arg11: memref<2x32xf32, #tpu.memory_space<vmem>>) attributes {dimension_semantics = [#tpu.dimension_semantics<parallel>, #tpu.dimension_semantics<arbitrary>], iteration_bounds = array<i64: 1, 8>, scalar_prefetch = 0 : i64, scratch_operands = 2 : i64, tpu.core_type = #tpu.core_type<tc>, window_params = [{transform_indices = @transform_0, window_bounds = array<i64: 1, 2, 32>}, {transform_indices = @transform_1, window_bounds = array<i64: 1, 2, 1>}, {pipeline_mode = #tpu.pipeline_mode<synchronous>, transform_indices = @transform_2, window_bounds = array<i64: 32, 128>}, {pipeline_mode = #tpu.pipeline_mode<synchronous>, transform_indices = @transform_3, window_bounds = array<i64: 32, 128>}, {pipeline_mode = #tpu.pipeline_mode<synchronous>, transform_indices = @transform_4, window_bounds = array<i64: 1, 128>}, {transform_indices = @transform_5, window_bounds = array<i64: 1, 2, 32>}, {transform_indices = @transform_6, window_bounds = array<i64: 2, 32>}, {transform_indices = @transform_7, window_bounds = array<i64: 2, 32>}]} {
    %c0_i32 = arith.constant 0 : i32
    %0 = arith.cmpi eq, %arg1, %c0_i32 : i32
    %1 = arith.extui %0 : i1 to i32
    %c0_i32_0 = arith.constant 0 : i32
    %2 = arith.cmpi ne, %1, %c0_i32_0 : i32
    scf.if %2 {
      %cst_30 = arith.constant 0.000000e+00 : f32
      %66 = vector.broadcast %cst_30 : f32 to vector<2x32xf32>
      %c0_31 = arith.constant 0 : index
      %c0_32 = arith.constant 0 : index
      %67 = vector.load %arg10[%c0_31, %c0_32] : memref<2x32xf32, #tpu.memory_space<vmem>>, vector<2x32xf32>
      tpu.vector_store %arg10[%c0_31, %c0_32], %66 {strides = array<i32>} : memref<2x32xf32, #tpu.memory_space<vmem>>, vector<2x32xf32>,
      %cst_33 = arith.constant 0.000000e+00 : f32
      %68 = vector.broadcast %cst_33 : f32 to vector<2x32xf32>
      %c0_34 = arith.constant 0 : index
      %c0_35 = arith.constant 0 : index
      %69 = vector.load %arg11[%c0_34, %c0_35] : memref<2x32xf32, #tpu.memory_space<vmem>>, vector<2x32xf32>
      tpu.vector_store %arg11[%c0_34, %c0_35], %68 {strides = array<i32>} : memref<2x32xf32, #tpu.memory_space<vmem>>, vector<2x32xf32>,
    } else {
    }
    %c0 = arith.constant 0 : index
    %c0_1 = arith.constant 0 : index
    %c0_2 = arith.constant 0 : index
    %3 = vector.load %arg2[%c0, %c0_1, %c0_2] : memref<1x2x32xf32, #tpu.memory_space<vmem>>, vector<1x2x32xf32>
    %4 = vector.shape_cast %3 : vector<1x2x32xf32> to vector<2x32xf32>
    %c0_3 = arith.constant 0 : index
    %c0_4 = arith.constant 0 : index
    %c0_5 = arith.constant 0 : index
    %5 = vector.load %arg3[%c0_3, %c0_4, %c0_5] : memref<1x2x1xf32, #tpu.memory_space<vmem>>, vector<1x2x1xf32>
    %6 = vector.shape_cast %5 : vector<1x2x1xf32> to vector<2x1xf32>
    %c0_6 = arith.constant 0 : index
    %c0_7 = arith.constant 0 : index
    %7 = vector.load %arg10[%c0_6, %c0_7] : memref<2x32xf32, #tpu.memory_space<vmem>>, vector<2x32xf32>
    %c0_8 = arith.constant 0 : index
    %c0_9 = arith.constant 0 : index
    %8 = vector.load %arg11[%c0_8, %c0_9] : memref<2x32xf32, #tpu.memory_space<vmem>>, vector<2x32xf32>
    %c0_10 = arith.constant 0 : index
    %c0_11 = arith.constant 0 : index
    %9 = vector.load %arg4[%c0_10, %c0_11] : memref<32x128xf32, #tpu.memory_space<vmem>>, vector<32x128xf32>
    %cst = arith.constant dense<0.000000e+00> : vector<2x128xf32>
    %10 = tpu.matmul %4, %9, %cst {dimension_numbers = #tpu.dot_dimension_numbers<[1], [0], [0], [1], [0, 0, 1, 1], [], []>} : vector<2x32xf32>, vector<32x128xf32>, vector<2x128xf32> -> vector<2x128xf32>
    %c0_12 = arith.constant 0 : index
    %c0_13 = arith.constant 0 : index
    %11 = vector.load %arg5[%c0_12, %c0_13] : memref<32x128xf32, #tpu.memory_space<vmem>>, vector<32x128xf32>
    %cst_14 = arith.constant dense<0.000000e+00> : vector<2x128xf32>
    %12 = tpu.matmul %7, %11, %cst_14 {dimension_numbers = #tpu.dot_dimension_numbers<[1], [0], [0], [1], [0, 0, 1, 1], [], []>} : vector<2x32xf32>, vector<32x128xf32>, vector<2x128xf32> -> vector<2x128xf32>
    %13 = arith.addf %10, %12 : vector<2x128xf32>
    %c0_15 = arith.constant 0 : index
    %c0_16 = arith.constant 0 : index
    %14 = vector.load %arg6[%c0_15, %c0_16] : memref<1x128xf32, #tpu.memory_space<vmem>>, vector<1x128xf32>
    %15 = vector.broadcast %14 : vector<1x128xf32> to vector<2x128xf32>
    %16 = arith.addf %13, %15 : vector<2x128xf32>
    %17 = vector.extract_strided_slice %16 {offsets = [0, 0], sizes = [2, 32], strides = [1, 1]} : vector<2x128xf32> to vector<2x32xf32>
    %18 = arith.negf %17 : vector<2x32xf32>
    %19 = math.exp %18 : vector<2x32xf32>
    %cst_17 = arith.constant 1.000000e+00 : f32
    %20 = vector.broadcast %cst_17 : f32 to vector<2x32xf32>
    %21 = arith.addf %20, %19 : vector<2x32xf32>
    %22 = arith.divf %20, %21 : vector<2x32xf32>
    %23 = vector.extract_strided_slice %16 {offsets = [0, 32], sizes = [2, 32], strides = [1, 1]} : vector<2x128xf32> to vector<2x32xf32>
    %24 = arith.negf %23 : vector<2x32xf32>
    %25 = math.exp %24 : vector<2x32xf32>
    %cst_18 = arith.constant 1.000000e+00 : f32
    %26 = vector.broadcast %cst_18 : f32 to vector<2x32xf32>
    %27 = arith.addf %26, %25 : vector<2x32xf32>
    %28 = arith.divf %26, %27 : vector<2x32xf32>
    %29 = vector.extract_strided_slice %16 {offsets = [0, 64], sizes = [2, 32], strides = [1, 1]} : vector<2x128xf32> to vector<2x32xf32>
    %30 = math.tanh %29 : vector<2x32xf32>
    %31 = vector.extract_strided_slice %16 {offsets = [0, 96], sizes = [2, 32], strides = [1, 1]} : vector<2x128xf32> to vector<2x32xf32>
    %32 = arith.negf %31 : vector<2x32xf32>
    %33 = math.exp %32 : vector<2x32xf32>
    %cst_19 = arith.constant 1.000000e+00 : f32
    %34 = vector.broadcast %cst_19 : f32 to vector<2x32xf32>
    %35 = arith.addf %34, %33 : vector<2x32xf32>
    %36 = arith.divf %34, %35 : vector<2x32xf32>
    %37 = arith.mulf %28, %8 : vector<2x32xf32>
    %38 = arith.mulf %22, %30 : vector<2x32xf32>
    %39 = arith.addf %37, %38 : vector<2x32xf32>
    %40 = math.tanh %39 : vector<2x32xf32>
    %41 = arith.mulf %36, %40 : vector<2x32xf32>
    %42 = vector.broadcast %6 : vector<2x1xf32> to vector<2x32xf32>
    %43 = arith.mulf %42, %39 : vector<2x32xf32>
    %cst_20 = arith.constant 1.000000e+00 : f32
    %44 = vector.broadcast %cst_20 : f32 to vector<2x1xf32>
    %45 = arith.subf %44, %6 : vector<2x1xf32>
    %46 = vector.broadcast %45 : vector<2x1xf32> to vector<2x32xf32>
    %47 = arith.mulf %46, %8 : vector<2x32xf32>
    %48 = arith.addf %43, %47 : vector<2x32xf32>
    %c0_21 = arith.constant 0 : index
    %c0_22 = arith.constant 0 : index
    %49 = vector.load %arg11[%c0_21, %c0_22] : memref<2x32xf32, #tpu.memory_space<vmem>>, vector<2x32xf32>
    tpu.vector_store %arg11[%c0_21, %c0_22], %48 {strides = array<i32>} : memref<2x32xf32, #tpu.memory_space<vmem>>, vector<2x32xf32>,
    %50 = vector.broadcast %6 : vector<2x1xf32> to vector<2x32xf32>
    %51 = arith.mulf %50, %41 : vector<2x32xf32>
    %cst_23 = arith.constant 1.000000e+00 : f32
    %52 = vector.broadcast %cst_23 : f32 to vector<2x1xf32>
    %53 = arith.subf %52, %6 : vector<2x1xf32>
    %54 = vector.broadcast %53 : vector<2x1xf32> to vector<2x32xf32>
    %55 = arith.mulf %54, %7 : vector<2x32xf32>
    %56 = arith.addf %51, %55 : vector<2x32xf32>
    %c0_24 = arith.constant 0 : index
    %c0_25 = arith.constant 0 : index
    %57 = vector.load %arg10[%c0_24, %c0_25] : memref<2x32xf32, #tpu.memory_space<vmem>>, vector<2x32xf32>
    tpu.vector_store %arg10[%c0_24, %c0_25], %56 {strides = array<i32>} : memref<2x32xf32, #tpu.memory_space<vmem>>, vector<2x32xf32>,
    %58 = vector.broadcast %6 : vector<2x1xf32> to vector<2x32xf32>
    %59 = arith.mulf %58, %41 : vector<2x32xf32>
    %c0_26 = arith.constant 0 : index
    %c0_27 = arith.constant 0 : index
    %c0_28 = arith.constant 0 : index
    %60 = vector.load %arg7[%c0_26, %c0_27, %c0_28] : memref<1x2x32xf32, #tpu.memory_space<vmem>>, vector<1x2x32xf32>
    %61 = vector.shape_cast %60 : vector<1x2x32xf32> to vector<2x32xf32>
    %62 = vector.shape_cast %59 : vector<2x32xf32> to vector<1x2x32xf32>
    tpu.vector_store %arg7[%c0_26, %c0_27, %c0_28], %62 {strides = array<i32>} : memref<1x2x32xf32, #tpu.memory_space<vmem>>, vector<1x2x32xf32>,
    %c7_i32 = arith.constant 7 : i32
    %63 = arith.cmpi eq, %arg1, %c7_i32 : i32
    %64 = arith.extui %63 : i1 to i32
    %c0_i32_29 = arith.constant 0 : i32
    %65 = arith.cmpi ne, %64, %c0_i32_29 : i32
    scf.if %65 {
      %c0_30 = arith.constant 0 : index
      %c0_31 = arith.constant 0 : index
      %66 = vector.load %arg10[%c0_30, %c0_31] : memref<2x32xf32, #tpu.memory_space<vmem>>, vector<2x32xf32>
      %c0_32 = arith.constant 0 : index
      %c0_33 = arith.constant 0 : index
      %67 = vector.load %arg8[%c0_32, %c0_33] : memref<2x32xf32, #tpu.memory_space<vmem>>, vector<2x32xf32>
      tpu.vector_store %arg8[%c0_32, %c0_33], %66 {strides = array<i32>} : memref<2x32xf32, #tpu.memory_space<vmem>>, vector<2x32xf32>,
      %c0_34 = arith.constant 0 : index
      %c0_35 = arith.constant 0 : index
      %68 = vector.load %arg11[%c0_34, %c0_35] : memref<2x32xf32, #tpu.memory_space<vmem>>, vector<2x32xf32>
      %c0_36 = arith.constant 0 : index
      %c0_37 = arith.constant 0 : index
      %69 = vector.load %arg9[%c0_36, %c0_37] : memref<2x32xf32, #tpu.memory_space<vmem>>, vector<2x32xf32>
      tpu.vector_store %arg9[%c0_36, %c0_37], %68 {strides = array<i32>} : memref<2x32xf32, #tpu.memory_space<vmem>>, vector<2x32xf32>,
    } else {
    }
    return
  }
  func.func @transform_0(%arg0: i32, %arg1: i32) -> (i32, i32, i32) {
    %c0_i32 = arith.constant 0 : i32
    %c0_i32_0 = arith.constant 0 : i32
    return %arg1, %arg0, %c0_i32 : i32, i32, i32
  }
  func.func @transform_1(%arg0: i32, %arg1: i32) -> (i32, i32, i32) {
    %c0_i32 = arith.constant 0 : i32
    %c0_i32_0 = arith.constant 0 : i32
    return %arg1, %arg0, %c0_i32 : i32, i32, i32
  }
  func.func @transform_2(%arg0: i32, %arg1: i32) -> (i32, i32) {
    %c0_i32 = arith.constant 0 : i32
    %c0_i32_0 = arith.constant 0 : i32
    %c0_i32_1 = arith.constant 0 : i32
    return %c0_i32, %c0_i32_0 : i32, i32
  }
  func.func @transform_3(%arg0: i32, %arg1: i32) -> (i32, i32) {
    %c0_i32 = arith.constant 0 : i32
    %c0_i32_0 = arith.constant 0 : i32
    %c0_i32_1 = arith.constant 0 : i32
    return %c0_i32, %c0_i32_0 : i32, i32
  }
  func.func @transform_4(%arg0: i32, %arg1: i32) -> (i32, i32) {
    %c0_i32 = arith.constant 0 : i32
    %c0_i32_0 = arith.constant 0 : i32
    %c0_i32_1 = arith.constant 0 : i32
    return %c0_i32, %c0_i32_0 : i32, i32
  }
  func.func @transform_5(%arg0: i32, %arg1: i32) -> (i32, i32, i32) {
    %c0_i32 = arith.constant 0 : i32
    %c0_i32_0 = arith.constant 0 : i32
    return %arg1, %arg0, %c0_i32 : i32, i32, i32
  }
  func.func @transform_6(%arg0: i32, %arg1: i32) -> (i32, i32) {
    %c0_i32 = arith.constant 0 : i32
    %c0_i32_0 = arith.constant 0 : i32
    return %arg0, %c0_i32 : i32, i32
  }
  func.func @transform_7(%arg0: i32, %arg1: i32) -> (i32, i32) {
    %c0_i32 = arith.constant 0 : i32
    %c0_i32_0 = arith.constant 0 : i32
    return %arg0, %c0_i32 : i32, i32
  }
}

</mosaic_0001>

<llo_original>
// kernel: tpu_custom_call.1
$region0: #{tpu_custom_call.1}
  #allocation0 [shape = 'u32[]', space=smem, size = 0x4, offset = 0x4, fixed_abs, tag = 'smem constant byte address 0x4 - core index']
  #allocation1 [shape = 'u32[144,128]{1,0:T(1,128)}', space=vmem, size = 0x12000, scoped, tag = 'internal scratch']
  #allocation2 [shape = 'f32[2,32]{1,0:T(2,128)}', space=vmem, size = 0x400, scoped, tag = 'scratch operand']
  #allocation3 [shape = 'f32[2,32]{1,0:T(2,128)}', space=vmem, size = 0x400, scoped, tag = 'scratch operand']
  %s0 = inlined_call_operand.hbm [shape: f32[8,2,32], index: 0, kind: input, shape index: {}]
  %s1 = inlined_call_operand.hbm [shape: f32[8,2,1], index: 1, kind: input, shape index: {}]
  %s2 = inlined_call_operand.hbm [shape: f32[32,128], index: 2, kind: input, shape index: {}]
  %s3 = inlined_call_operand.hbm [shape: f32[32,128], index: 3, kind: input, shape index: {}]
  %s4 = inlined_call_operand.hbm [shape: f32[1,128], index: 4, kind: input, shape index: {}]
  %s5 = inlined_call_operand.hbm [shape: f32[8,2,32], index: 5, kind: output, shape index: {0}]
  %s6 = inlined_call_operand.hbm [shape: f32[2,32], index: 6, kind: output, shape index: {1}]
  %s7 = inlined_call_operand.hbm [shape: f32[2,32], index: 7, kind: output, shape index: {2}]
  %8 = xla_tuple %s5, %s6, %s7
  %s9 = sld [smem:[#allocation0]]
  $region97: #{tpu_custom_call.1} parent=0
    _
  %s11 = ssub.s32 1, %s9
  %s12 = scalar_select 0, %s11, %s9
  $region1: #{tpu_custom_call.1} parent=0
    #allocation4 [shape = 'u8[2048]{0}', space=vmem, size = 0x800, scoped, tag = 'input window, operand 0']
    #allocation5 [shape = 's32[2]{0}', space=sflag, size = 0x8, scoped, tag = 'scoped memory for tpu_custom_call.1']
    #allocation6 [shape = 's32[2]{0}', space=sflag, size = 0x8, scoped, tag = 'scoped memory for tpu_custom_call.1']
    #allocation7 [shape = 'u8[2048]{0}', space=vmem, size = 0x800, scoped, tag = 'input window, operand 1']
    #allocation8 [shape = 's32[2]{0}', space=sflag, size = 0x8, scoped, tag = 'scoped memory for tpu_custom_call.1']
    #allocation9 [shape = 'u8[16384]{0}', space=vmem, size = 0x4000, scoped, tag = 'input window, operand 2, single buffered']
    #allocation10 [shape = 'u8[16384]{0}', space=vmem, size = 0x4000, scoped, tag = 'input window, operand 3, single buffered']
    #allocation11 [shape = 's32[1]{0}', space=sflag, size = 0x4, scoped, tag = 'scoped memory for tpu_custom_call.1']
    #allocation12 [shape = 'u8[512]{0}', space=vmem, size = 0x400, scoped, tag = 'input window, operand 4, single buffered']
    #allocation13 [shape = 'u8[2048]{0}', space=vmem, size = 0x800, scoped, tag = 'output window, operand 0']
    #allocation14 [shape = 'u8[1024]{0}', space=vmem, size = 0x400, scoped, tag = 'output window, operand 1, single buffered']
    #allocation15 [shape = 's32[1]{0}', space=sflag, size = 0x4, scoped, tag = 'scoped memory for tpu_custom_call.1']
    #allocation16 [shape = 'u8[1024]{0}', space=vmem, size = 0x400, scoped, tag = 'output window, operand 2, single buffered']
    %13 = vsyncpa [#allocation5], 0
    %s14 = scalar_lea.sflag [#allocation5], 1
    %15 = vsyncpa %s14, 0
    %16 = vsyncpa [#allocation8], 0
    %s17 = scalar_lea.sflag [#allocation8], 1
    %18 = vsyncpa %s17, 0
    %19 = vsyncpa [#allocation11], 0
    %20 = vsyncpa [#allocation6], 0
    %s21 = scalar_lea.sflag [#allocation6], 1
    %22 = vsyncpa %s21, 0
    %23 = vsyncpa [#allocation15], 0
    loop: start=0, step=1, limit=10
    $region2: #{tpu_custom_call.1} parent=1 // loop_pre_header
      _
    $region3: #{tpu_custom_call.1} parent=1 // loop_header
      %s25 = sphi 0, %s29
      %p26 = scmp.ge.s32.totalorder %s25, 10
      %s32 = sphi 0, %s44
      %s33 = sphi 0, %s40
      %s34 = sphi 0, %s32
      %s35 = sphi 0, %s33
      %s36 = sphi 0, %s34
      %s37 = sphi 0, %s35
      %s49 = sphi 0, %s51
      %s52 = sphi 0, %s49
      %s53 = sphi 0, %s52
      %s69 = sphi 0, %s53
      %s77 = sphi 0, %s79
      %s80 = sphi 0, %s77
      %s81 = sphi 0, %s80
      %s97 = sphi 0, %s81
      %s101 = sphi 0, %s101
      %s103 = sphi 0, %s101
      %s104 = sphi 0, %s103
      %s118 = sphi 0, %s104
      %s122 = sphi 0, %s122
      %s124 = sphi 0, %s122
      %s125 = sphi 0, %s124
      %s139 = sphi 0, %s125
      %s143 = sphi 0, %s143
      %s145 = sphi 0, %s143
      %s146 = sphi 0, %s145
      %s160 = sphi 0, %s146
      %s168 = sphi 0, %s170
      %s171 = sphi 0, %s168
      %s172 = sphi 0, %s171
      %s188 = sphi 0, %s172
      %s194 = sphi 0, %s196
      %s197 = sphi 0, %s194
      %s198 = sphi 0, %s197
      %s214 = sphi 0, %s198
      %s220 = sphi 0, %s222
      %s223 = sphi 0, %s220
      %s224 = sphi 0, %s223
      %s240 = sphi 0, %s224
    $region4: #{tpu_custom_call.1} parent=1 // loop_header_branch
      %28 = sbr.rel (%p26) target = $region8
    $region5: #{tpu_custom_call.1} parent=1 // loop_body
      %s30 = ssub.s32 %s25, 1
      %s31 = ssub.s32 %s25, 2
      %s38 = sadd.s32 1, %s33
      %p39 = scmp.ge.s32.totalorder %s38, 8
      %s40 = scalar_select %p39, 0, %s38
      %s41 = sadd.s32 1, %s32
      %s42 = scalar_select %p39, %s41, %s32
      %p43 = scmp.ge.s32.totalorder %s42, 1
      %s44 = scalar_select %p43, 0, %s42
      %s45 = ssub.s32 %s33, %s40
      %s46 = ssub.s32 %s32, %s44
      %s47 = sor.u32 %s45, %s46
      %p48 = scmp.eq.s32.totalorder %s47, 0
      %s50 = sadd.s32 %s49, 1
      %s51 = scalar_select %p48, %s49, %s50
      %p54 = pneg %p48
      %p55 = scmp.eq.s32.totalorder %s25, 7
      %p56 = por %p54, %p55
      %p57 = scmp.ne.s32.totalorder %s49, %s52
      %p58 = scmp.eq.s32.totalorder %s25, 0
      %p59 = por %p57, %p58
      %p60 = scmp.ne.s32.totalorder %s49, %s52
      %p61 = scmp.eq.s32.totalorder %s30, 7
      %p62 = por %p60, %p61
      %p63 = scmp.ne.s32.totalorder %s52, %s53
      %p64 = scmp.eq.s32.totalorder %s30, 0
      %p65 = por %p63, %p64
      %p66 = scmp.ne.s32.totalorder %s52, %s53
      %p67 = scmp.eq.s32.totalorder %s31, 7
      %p68 = por %p66, %p67
      %p70 = scmp.ne.s32.totalorder %s53, %s69
      %p71 = scmp.eq.s32.totalorder %s31, 0
      %p72 = por %p70, %p71
      %s73 = ssub.s32 %s33, %s40
      %s74 = ssub.s32 %s32, %s44
      %s75 = sor.u32 %s73, %s74
      %p76 = scmp.eq.s32.totalorder %s75, 0
      %s78 = sadd.s32 %s77, 1
      %s79 = scalar_select %p76, %s77, %s78
      %p82 = pneg %p76
      %p83 = scmp.eq.s32.totalorder %s25, 7
      %p84 = por %p82, %p83
      %p85 = scmp.ne.s32.totalorder %s77, %s80
      %p86 = scmp.eq.s32.totalorder %s25, 0
      %p87 = por %p85, %p86
      %p88 = scmp.ne.s32.totalorder %s77, %s80
      %p89 = scmp.eq.s32.totalorder %s30, 7
      %p90 = por %p88, %p89
      %p91 = scmp.ne.s32.totalorder %s80, %s81
      %p92 = scmp.eq.s32.totalorder %s30, 0
      %p93 = por %p91, %p92
      %p94 = scmp.ne.s32.totalorder %s80, %s81
      %p95 = scmp.eq.s32.totalorder %s31, 7
      %p96 = por %p94, %p95
      %p98 = scmp.ne.s32.totalorder %s81, %s97
      %p99 = scmp.eq.s32.totalorder %s31, 0
      %p100 = por %p98, %p99
      %s102 = sadd.s32 %s101, 1
      %p105 = scmp.eq.s32.totalorder %s25, 7
      %p106 = scmp.ne.s32.totalorder %s101, %s103
      %p107 = scmp.eq.s32.totalorder %s25, 0
      %p108 = por %p106, %p107
      %p109 = scmp.ne.s32.totalorder %s101, %s103
      %p110 = scmp.eq.s32.totalorder %s30, 7
      %p111 = por %p109, %p110
      %p112 = scmp.ne.s32.totalorder %s103, %s104
      %p113 = scmp.eq.s32.totalorder %s30, 0
      %p114 = por %p112, %p113
      %p115 = scmp.ne.s32.totalorder %s103, %s104
      %p116 = scmp.eq.s32.totalorder %s31, 7
      %p117 = por %p115, %p116
      %p119 = scmp.ne.s32.totalorder %s104, %s118
      %p120 = scmp.eq.s32.totalorder %s31, 0
      %p121 = por %p119, %p120
      %s123 = sadd.s32 %s122, 1
      %p126 = scmp.eq.s32.totalorder %s25, 7
      %p127 = scmp.ne.s32.totalorder %s122, %s124
      %p128 = scmp.eq.s32.totalorder %s25, 0
      %p129 = por %p127, %p128
      %p130 = scmp.ne.s32.totalorder %s122, %s124
      %p131 = scmp.eq.s32.totalorder %s30, 7
      %p132 = por %p130, %p131
      %p133 = scmp.ne.s32.totalorder %s124, %s125
      %p134 = scmp.eq.s32.totalorder %s30, 0
      %p135 = por %p133, %p134
      %p136 = scmp.ne.s32.totalorder %s124, %s125
      %p137 = scmp.eq.s32.totalorder %s31, 7
      %p138 = por %p136, %p137
      %p140 = scmp.ne.s32.totalorder %s125, %s139
      %p141 = scmp.eq.s32.totalorder %s31, 0
      %p142 = por %p140, %p141
      %s144 = sadd.s32 %s143, 1
      %p147 = scmp.eq.s32.totalorder %s25, 7
      %p148 = scmp.ne.s32.totalorder %s143, %s145
      %p149 = scmp.eq.s32.totalorder %s25, 0
      %p150 = por %p148, %p149
      %p151 = scmp.ne.s32.totalorder %s143, %s145
      %p152 = scmp.eq.s32.totalorder %s30, 7
      %p153 = por %p151, %p152
      %p154 = scmp.ne.s32.totalorder %s145, %s146
      %p155 = scmp.eq.s32.totalorder %s30, 0
      %p156 = por %p154, %p155
      %p157 = scmp.ne.s32.totalorder %s145, %s146
      %p158 = scmp.eq.s32.totalorder %s31, 7
      %p159 = por %p157, %p158
      %p161 = scmp.ne.s32.totalorder %s146, %s160
      %p162 = scmp.eq.s32.totalorder %s31, 0
      %p163 = por %p161, %p162
      %s164 = ssub.s32 %s33, %s40
      %s165 = ssub.s32 %s32, %s44
      %s166 = sor.u32 %s164, %s165
      %p167 = scmp.eq.s32.totalorder %s166, 0
      %s169 = sadd.s32 %s168, 1
      %s170 = scalar_select %p167, %s168, %s169
      %p173 = pneg %p167
      %p174 = scmp.eq.s32.totalorder %s25, 7
      %p175 = por %p173, %p174
      %p176 = scmp.ne.s32.totalorder %s168, %s171
      %p177 = scmp.eq.s32.totalorder %s25, 0
      %p178 = por %p176, %p177
      %p179 = scmp.ne.s32.totalorder %s168, %s171
      %p180 = scmp.eq.s32.totalorder %s30, 7
      %p181 = por %p179, %p180
      %p182 = scmp.ne.s32.totalorder %s171, %s172
      %p183 = scmp.eq.s32.totalorder %s30, 0
      %p184 = por %p182, %p183
      %p185 = scmp.ne.s32.totalorder %s171, %s172
      %p186 = scmp.eq.s32.totalorder %s31, 7
      %p187 = por %p185, %p186
      %p189 = scmp.ne.s32.totalorder %s172, %s188
      %p190 = scmp.eq.s32.totalorder %s31, 0
      %p191 = por %p189, %p190
      %s192 = ssub.s32 %s32, %s44
      %p193 = scmp.eq.s32.totalorder %s192, 0
      %s195 = sadd.s32 %s194, 1
      %s196 = scalar_select %p193, %s194, %s195
      %p199 = pneg %p193
      %p200 = scmp.eq.s32.totalorder %s25, 7
      %p201 = por %p199, %p200
      %p202 = scmp.ne.s32.totalorder %s194, %s197
      %p203 = scmp.eq.s32.totalorder %s25, 0
      %p204 = por %p202, %p203
      %p205 = scmp.ne.s32.totalorder %s194, %s197
      %p206 = scmp.eq.s32.totalorder %s30, 7
      %p207 = por %p205, %p206
      %p208 = scmp.ne.s32.totalorder %s197, %s198
      %p209 = scmp.eq.s32.totalorder %s30, 0
      %p210 = por %p208, %p209
      %p211 = scmp.ne.s32.totalorder %s197, %s198
      %p212 = scmp.eq.s32.totalorder %s31, 7
      %p213 = por %p211, %p212
      %p215 = scmp.ne.s32.totalorder %s198, %s214
      %p216 = scmp.eq.s32.totalorder %s31, 0
      %p217 = por %p215, %p216
      %s218 = ssub.s32 %s32, %s44
      %p219 = scmp.eq.s32.totalorder %s218, 0
      %s221 = sadd.s32 %s220, 1
      %s222 = scalar_select %p219, %s220, %s221
      %p225 = pneg %p219
      %p226 = scmp.eq.s32.totalorder %s25, 7
      %p227 = por %p225, %p226
      %p228 = scmp.ne.s32.totalorder %s220, %s223
      %p229 = scmp.eq.s32.totalorder %s25, 0
      %p230 = por %p228, %p229
      %p231 = scmp.ne.s32.totalorder %s220, %s223
      %p232 = scmp.eq.s32.totalorder %s30, 7
      %p233 = por %p231, %p232
      %p234 = scmp.ne.s32.totalorder %s223, %s224
      %p235 = scmp.eq.s32.totalorder %s30, 0
      %p236 = por %p234, %p235
      %p237 = scmp.ne.s32.totalorder %s223, %s224
      %p238 = scmp.eq.s32.totalorder %s31, 7
      %p239 = por %p237, %p238
      %p241 = scmp.ne.s32.totalorder %s224, %s240
      %p242 = scmp.eq.s32.totalorder %s31, 0
      %p243 = por %p241, %p242
      %p244 = scmp.le.s32.totalorder 1, %s25
      %p245 = scmp.lt.s32.totalorder %s25, 9
      %p246 = pnand %p244, %p245
      %p247 = pneg %p246
      // Predicated region
      $region9: #{tpu_custom_call.1} parent=5 // pred_check
        _
      $region10: #{tpu_custom_call.1} parent=5 // pred_check_branch
        %249 = sbr.rel (%p246) target = $region12
      $region11: #{tpu_custom_call.1} parent=5 // pred_region
        %s250 = ssub.s32 %s25, 1
        // Predicated region
        $region13: #{tpu_custom_call.1} parent=11 // pred_check
          %p251 = pneg %p114
        $region14: #{tpu_custom_call.1} parent=11 // pred_check_branch
          %253 = sbr.rel (%p251) target = $region16
        $region15: #{tpu_custom_call.1} parent=11 // pred_region
          %s255 = ssub.s32 512, 512
          %256 = vsyncadd [#allocation8], %s255
          %s257 = sshll.u32 [#allocation9], 4
          %s258 = int_to_ptr.vmem [resolvable:$true] %s257
          %263 = dma.hbm_to_vmem [thread:$0]  %s2, 512, %s258, [#allocation8], 128, 128, 8
        $region16: #{tpu_custom_call.1} parent=11 // pred_fallthru
          _
        // Predicated region
        $region17: #{tpu_custom_call.1} parent=11 // pred_check
          %p264 = pneg %p135
        $region18: #{tpu_custom_call.1} parent=11 // pred_check_branch
          %266 = sbr.rel (%p264) target = $region20
        $region19: #{tpu_custom_call.1} parent=11 // pred_region
          %s268 = ssub.s32 512, 512
          %269 = vsyncadd [#allocation11], %s268
          %s270 = sshll.u32 [#allocation10], 4
          %s271 = int_to_ptr.vmem [resolvable:$true] %s270
          %276 = dma.hbm_to_vmem [thread:$0]  %s3, 512, %s271, [#allocation11], 128, 128, 8
        $region20: #{tpu_custom_call.1} parent=11 // pred_fallthru
          _
        // Predicated region
        $region21: #{tpu_custom_call.1} parent=11 // pred_check
          %p277 = pneg %p156
        $region22: #{tpu_custom_call.1} parent=11 // pred_check_branch
          %279 = sbr.rel (%p277) target = $region24
        $region23: #{tpu_custom_call.1} parent=11 // pred_region
          %s281 = ssub.s32 16, 16
          %282 = vsyncadd [#allocation11], %s281
          %s284 = sshll.u32 [#allocation12], 4
          %s285 = int_to_ptr.vmem [resolvable:$true] %s284
          %287 = dma.hbm_to_vmem [thread:$0]  %s4, 16, %s285, [#allocation11]
        $region24: #{tpu_custom_call.1} parent=11 // pred_fallthru
          _
      $region12: #{tpu_custom_call.1} parent=5 // pred_fallthru
        _
      %p288 = scmp.lt.s32.totalorder %s25, 8
      // Predicated region
      $region25: #{tpu_custom_call.1} parent=5 // pred_check
        %p289 = pneg %p288
      $region26: #{tpu_custom_call.1} parent=5 // pred_check_branch
        %291 = sbr.rel (%p289) target = $region28
      $region27: #{tpu_custom_call.1} parent=5 // pred_region
        // Predicated region
        $region29: #{tpu_custom_call.1} parent=27 // pred_check
          %p292 = pneg %p59
        $region30: #{tpu_custom_call.1} parent=27 // pred_check_branch
          %294 = sbr.rel (%p292) target = $region32
        $region31: #{tpu_custom_call.1} parent=27 // pred_region
          %s295 = sand.u32 %s49, 1
          %s296 = scalar_lea.sflag [#allocation5], %s295
          %s297 = sand.u32 %s49, 1
          %s298 = smul.addr %s297, 2
          %s299 = scalar_lea.vmem [#allocation4], %s298
          %s301 = ssub.s32 32, 32
          %302 = vsyncadd %s296, %s301
          %s303 = sadd.s32 %s32, %s33
          %s304 = smul.addr %s303, 32
          %s305 = scalar_lea.hbm %s0, %s304
          %s307 = sshll.u32 %s299, 4
          %s308 = int_to_ptr.vmem [resolvable:$true] %s307
          %310 = dma.hbm_to_vmem [thread:$0]  %s305, 32, %s308, %s296
        $region32: #{tpu_custom_call.1} parent=27 // pred_fallthru
          _
        // Predicated region
        $region33: #{tpu_custom_call.1} parent=27 // pred_check
          %p311 = pneg %p87
        $region34: #{tpu_custom_call.1} parent=27 // pred_check_branch
          %313 = sbr.rel (%p311) target = $region36
        $region35: #{tpu_custom_call.1} parent=27 // pred_region
          %s314 = sand.u32 %s25, 1
          %s315 = scalar_lea.sflag [#allocation8], %s314
          %s316 = sand.u32 %s77, 1
          %s317 = smul.addr %s316, 2
          %s318 = scalar_lea.vmem [#allocation7], %s317
          %s320 = ssub.s32 32, 32
          %321 = vsyncadd %s315, %s320
          %s322 = sadd.s32 %s32, %s33
          %s323 = smul.addr %s322, 32
          %s324 = scalar_lea.hbm %s1, %s323
          %s326 = sshll.u32 %s318, 4
          %s327 = int_to_ptr.vmem [resolvable:$true] %s326
          %329 = dma.hbm_to_vmem [thread:$0]  %s324, 32, %s327, %s315
        $region36: #{tpu_custom_call.1} parent=27 // pred_fallthru
          _
      $region28: #{tpu_custom_call.1} parent=5 // pred_fallthru
        _
      %p330 = scmp.le.s32.totalorder 1, %s25
      %p331 = scmp.lt.s32.totalorder %s25, 9
      %p332 = pnand %p330, %p331
      %p333 = pneg %p332
      // Predicated region
      $region37: #{tpu_custom_call.1} parent=5 // pred_check
        _
      $region38: #{tpu_custom_call.1} parent=5 // pred_check_branch
        %335 = sbr.rel (%p332) target = $region40
      $region39: #{tpu_custom_call.1} parent=5 // pred_region
        %s336 = ssub.s32 %s25, 1
        %s337 = sand.u32 %s52, 1
        %s338 = scalar_lea.sflag [#allocation5], %s337
        %s339 = sand.u32 %s52, 1
        %s340 = smul.addr %s339, 2
        %s341 = scalar_lea.vmem [#allocation4], %s340
        // Predicated region
        $region41: #{tpu_custom_call.1} parent=39 // pred_check
          %p342 = pneg %p65
        $region42: #{tpu_custom_call.1} parent=39 // pred_check_branch
          %344 = sbr.rel (%p342) target = $region44
        $region43: #{tpu_custom_call.1} parent=39 // pred_region
          %345 = dma.done %s338, 32
        $region44: #{tpu_custom_call.1} parent=39 // pred_fallthru
          _
        %s346 = sand.u32 %s30, 1
        %s347 = scalar_lea.sflag [#allocation8], %s346
        %s348 = sand.u32 %s80, 1
        %s349 = smul.addr %s348, 2
        %s350 = scalar_lea.vmem [#allocation7], %s349
        // Predicated region
        $region45: #{tpu_custom_call.1} parent=39 // pred_check
          %p351 = pneg %p93
        $region46: #{tpu_custom_call.1} parent=39 // pred_check_branch
          %353 = sbr.rel (%p351) target = $region48
        $region47: #{tpu_custom_call.1} parent=39 // pred_region
          %354 = dma.done %s347, 32
        $region48: #{tpu_custom_call.1} parent=39 // pred_fallthru
          _
        // Predicated region
        $region49: #{tpu_custom_call.1} parent=39 // pred_check
          %p355 = pneg %p114
        $region50: #{tpu_custom_call.1} parent=39 // pred_check_branch
          %357 = sbr.rel (%p355) target = $region52
        $region51: #{tpu_custom_call.1} parent=39 // pred_region
          %358 = dma.done [#allocation8], 512
        $region52: #{tpu_custom_call.1} parent=39 // pred_fallthru
          _
        // Predicated region
        $region53: #{tpu_custom_call.1} parent=39 // pred_check
          %p359 = pneg %p135
        $region54: #{tpu_custom_call.1} parent=39 // pred_check_branch
          %361 = sbr.rel (%p359) target = $region56
        $region55: #{tpu_custom_call.1} parent=39 // pred_region
          %362 = dma.done [#allocation11], 512
        $region56: #{tpu_custom_call.1} parent=39 // pred_fallthru
          _
        // Predicated region
        $region57: #{tpu_custom_call.1} parent=39 // pred_check
          %p363 = pneg %p156
        $region58: #{tpu_custom_call.1} parent=39 // pred_check_branch
          %365 = sbr.rel (%p363) target = $region60
        $region59: #{tpu_custom_call.1} parent=39 // pred_region
          %366 = dma.done [#allocation11], 16
        $region60: #{tpu_custom_call.1} parent=39 // pred_fallthru
          _
        %s367 = sand.u32 %s52, 1
        %s368 = scalar_lea.sflag [#allocation5], %s367
        %s369 = sand.u32 %s52, 1
        %s370 = smul.addr %s369, 2
        %s371 = scalar_lea.vmem [#allocation4], %s370
        %p372 = pneg %p65
        %p373 = pneg %p62
        %s374 = sand.u32 %s30, 1
        %s375 = scalar_lea.sflag [#allocation8], %s374
        %s376 = sand.u32 %s80, 1
        %s377 = smul.addr %s376, 2
        %s378 = scalar_lea.vmem [#allocation7], %s377
        %p379 = pneg %p93
        %p380 = pneg %p90
        %p381 = pneg %p114
        %p382 = pneg %p111
        %p383 = pneg %p135
        %p384 = pneg %p132
        %p385 = pneg %p156
        %p386 = pneg %p153
        %p387 = pneg %p184
        %p388 = pneg %p181
        %s389 = sand.u32 %s171, 1
        %s390 = scalar_lea.sflag [#allocation6], %s389
        %s391 = sand.u32 %s171, 1
        %s392 = smul.addr %s391, 2
        %s393 = scalar_lea.vmem [#allocation13], %s392
        %p394 = pneg %p210
        %p395 = pneg %p207
        %p396 = pneg %p236
        %p397 = pneg %p233
        %p398 = scmp.eq.s32.totalorder %s35, 0
        // Predicated region
        $region61: #{tpu_custom_call.1} parent=39 // pred_check
          %p399 = pneg %p398
        $region62: #{tpu_custom_call.1} parent=39 // pred_check_branch
          %401 = sbr.rel (%p399) target = $region64
        $region63: #{tpu_custom_call.1} parent=39 // pred_region
          %vm402 = vcmask 254976
          %403 = vst.msk [vmem:[#allocation2] sm:$0x3] %vm402, 0.0
          %404 = vst.msk [vmem:[#allocation3] sm:$0x3] %vm402, 0.0
        $region64: #{tpu_custom_call.1} parent=39 // pred_fallthru
          _
        %v405 = vld [vmem:[%s341] sm:$0x3]
        %v406 = vld [vmem:[%s350] sm:$0x3]
        %v407 = vld [vmem:[#allocation2] sm:$0x3]
        %v408 = vld [vmem:[#allocation3] sm:$0x3]
        %v409 = vld [vmem:[#allocation9] sm:$0xff]
        %v410 = vld [vmem:[#allocation9 + $0x8] sm:$0xff]
        %v411 = vld [vmem:[#allocation9 + $0x10] sm:$0xff]
        %v412 = vld [vmem:[#allocation9 + $0x18] sm:$0xff]
        %v413 = vld [vmem:[#allocation10] sm:$0xff]
        %v414 = vld [vmem:[#allocation10 + $0x8] sm:$0xff]
        %v415 = vld [vmem:[#allocation10 + $0x10] sm:$0xff]
        %v416 = vld [vmem:[#allocation10 + $0x18] sm:$0xff]
        %vm417 = vcmask 261120
        %v419 = vsel %vm417, %v407, 0
        %421 = vmatprep.subr.mxu0 0.0
        %422 = vmatpush1.msra.mxu0 %v413
        %423 = vmatprep.subr.mxu0 0.0
        %424 = vmatpush1.msra.mxu0 %v414
        %425 = vmatprep.subr.mxu0 0.0
        %426 = vmatpush1.msra.mxu0 %v415
        %427 = vmatprep.subr.mxu0 0.0
        %428 = vmatpush1.msra.mxu0 %v416
        %429 = vmatprep.subr.mxu0 0.0
        %430 = vmatpush1.msra.mxu0 0.0
        %431 = vmatprep.subr.mxu0 0.0
        %432 = vmatpush1.msra.mxu0 0.0
        %433 = vmatprep.subr.mxu0 0.0
        %434 = vmatpush1.msra.mxu0 0.0
        %435 = vmatprep.subr.mxu0 0.0
        %436 = vmatpush1.msra.mxu0 0.0
        %437 = vmatprep.subr.mxu0 0.0
        %438 = vmatpush1.msra.mxu0 0.0
        %439 = vmatprep.subr.mxu0 0.0
        %440 = vmatpush1.msra.mxu0 0.0
        %441 = vmatprep.subr.mxu0 0.0
        %442 = vmatpush1.msra.mxu0 0.0
        %443 = vmatprep.subr.mxu0 0.0
        %444 = vmatpush1.msra.mxu0 0.0
        %445 = vmatprep.subr.mxu0 0.0
        %446 = vmatpush1.msra.mxu0 0.0
        %447 = vmatprep.subr.mxu0 0.0
        %448 = vmatpush1.msra.mxu0 0.0
        %449 = vmatprep.subr.mxu0 0.0
        %450 = vmatpush1.msra.mxu0 0.0
        %451 = vmatprep.subr.mxu0 0.0
        %452 = vmatpush1.msra.mxu0 0.0
        %453 = vmatprep.subr.mxu0 0.0
        %454 = vmatpush1.msra.mxu0 0.0
        %455 = vmatprep.subr.mxu0 0.0
        %456 = vmatpush1.msra.mxu0 0.0
        %457 = vmatprep.subr.mxu0 0.0
        %458 = vmatpush1.msra.mxu0 0.0
        %459 = vmatprep.subr.mxu0 0.0
        %460 = vmatpush1.msra.mxu0 0.0
        %461 = vmatprep.subr.mxu0 0.0
        %462 = vmatpush1.msra.mxu0 0.0
        %463 = vmatprep.subr.mxu0 0.0
        %464 = vmatpush1.msra.mxu0 0.0
        %465 = vmatprep.subr.mxu0 0.0
        %466 = vmatpush1.msra.mxu0 0.0
        %467 = vmatprep.subr.mxu0 0.0
        %468 = vmatpush1.msra.mxu0 0.0
        %469 = vmatprep.subr.mxu0 0.0
        %470 = vmatpush1.msra.mxu0 0.0
        %471 = vmatprep.subr.mxu0 0.0
        %472 = vmatpush1.msra.mxu0 0.0
        %473 = vmatprep.subr.mxu0 0.0
        %474 = vmatpush1.msra.mxu0 0.0
        %475 = vmatprep.subr.mxu0 0.0
        %476 = vmatpush1.msra.mxu0 0.0
        %477 = vmatprep.subr.mxu0 0.0
        %478 = vmatpush1.msra.mxu0 0.0
        %479 = vmatprep.subr.mxu0 0.0
        %480 = vmatpush1.msra.mxu0 0.0
        %481 = vmatprep.subr.mxu0 0.0
        %482 = vmatpush1.msra.mxu0 0.0
        %483 = vmatprep.subr.mxu0 0.0
        %484 = vmatpush1.msra.mxu0 0.0
        %485 = vmatprep.mubr.f32.mxu0 0.0
        %486 = vmatmul.mubr.f32.gmra.mrb[0].mxu0 %v419
        %v487 = vpop.f32.mrb[0].mxu0
        %v488 = vadd.f32 0.0, %v487
        %v489 = vpop.f32.mrb[0].mxu0
        %490 = vdwg.mxu0
        %v492 = vsel %vm417, %v405, 0
        %494 = vmatprep.subr.mxu0 0.0
        %495 = vmatpush1.msra.mxu0 %v409
        %496 = vmatprep.subr.mxu0 0.0
        %497 = vmatpush1.msra.mxu0 %v410
        %498 = vmatprep.subr.mxu0 0.0
        %499 = vmatpush1.msra.mxu0 %v411
        %500 = vmatprep.subr.mxu0 0.0
        %501 = vmatpush1.msra.mxu0 %v412
        %502 = vmatprep.subr.mxu0 0.0
        %503 = vmatpush1.msra.mxu0 0.0
        %504 = vmatprep.subr.mxu0 0.0
        %505 = vmatpush1.msra.mxu0 0.0
        %506 = vmatprep.subr.mxu0 0.0
        %507 = vmatpush1.msra.mxu0 0.0
        %508 = vmatprep.subr.mxu0 0.0
        %509 = vmatpush1.msra.mxu0 0.0
        %510 = vmatprep.subr.mxu0 0.0
        %511 = vmatpush1.msra.mxu0 0.0
        %512 = vmatprep.subr.mxu0 0.0
        %513 = vmatpush1.msra.mxu0 0.0
        %514 = vmatprep.subr.mxu0 0.0
        %515 = vmatpush1.msra.mxu0 0.0
        %516 = vmatprep.subr.mxu0 0.0
        %517 = vmatpush1.msra.mxu0 0.0
        %518 = vmatprep.subr.mxu0 0.0
        %519 = vmatpush1.msra.mxu0 0.0
        %520 = vmatprep.subr.mxu0 0.0
        %521 = vmatpush1.msra.mxu0 0.0
        %522 = vmatprep.subr.mxu0 0.0
        %523 = vmatpush1.msra.mxu0 0.0
        %524 = vmatprep.subr.mxu0 0.0
        %525 = vmatpush1.msra.mxu0 0.0
        %526 = vmatprep.subr.mxu0 0.0
        %527 = vmatpush1.msra.mxu0 0.0
        %528 = vmatprep.subr.mxu0 0.0
        %529 = vmatpush1.msra.mxu0 0.0
        %530 = vmatprep.subr.mxu0 0.0
        %531 = vmatpush1.msra.mxu0 0.0
        %532 = vmatprep.subr.mxu0 0.0
        %533 = vmatpush1.msra.mxu0 0.0
        %534 = vmatprep.subr.mxu0 0.0
        %535 = vmatpush1.msra.mxu0 0.0
        %536 = vmatprep.subr.mxu0 0.0
        %537 = vmatpush1.msra.mxu0 0.0
        %538 = vmatprep.subr.mxu0 0.0
        %539 = vmatpush1.msra.mxu0 0.0
        %540 = vmatprep.subr.mxu0 0.0
        %541 = vmatpush1.msra.mxu0 0.0
        %542 = vmatprep.subr.mxu0 0.0
        %543 = vmatpush1.msra.mxu0 0.0
        %544 = vmatprep.subr.mxu0 0.0
        %545 = vmatpush1.msra.mxu0 0.0
        %546 = vmatprep.subr.mxu0 0.0
        %547 = vmatpush1.msra.mxu0 0.0
        %548 = vmatprep.subr.mxu0 0.0
        %549 = vmatpush1.msra.mxu0 0.0
        %550 = vmatprep.subr.mxu0 0.0
        %551 = vmatpush1.msra.mxu0 0.0
        %552 = vmatprep.subr.mxu0 0.0
        %553 = vmatpush1.msra.mxu0 0.0
        %554 = vmatprep.subr.mxu0 0.0
        %555 = vmatpush1.msra.mxu0 0.0
        %556 = vmatprep.subr.mxu0 0.0
        %557 = vmatpush1.msra.mxu0 0.0
        %558 = vmatprep.mubr.f32.mxu0 0.0
        %559 = vmatmul.mubr.f32.gmra.mrb[0].mxu0 %v492
        %v560 = vpop.f32.mrb[0].mxu0
        %v561 = vadd.f32 %v488, %v560
        %v562 = vpop.f32.mrb[0].mxu0
        %563 = vdwg.mxu0
        %v564 = vld [vmem:[#allocation12] sm:$0x1]
        %v566 = vlaneseq
        %v567 = vshrl.u32 %v566, 7
        %v568 = vsub.s32 0, %v567
        %v569 = vrot.slane %v564, %v568
        %v571 = vadd.f32 %v561, %v569
        %v572 = vxor.u32 %v571, 2147483648
        %v573 = vmul.f32 %v572, 1.442695
        %v574 = vpow.pop %v573
        %v575 = vadd.f32 %v574, 1.0
        %v576 = vrcp.pop %v575
        %v577 = vmul.f32 1.0, %v576
        %v578 = vtanh.pop %v571
        %580 = vrot.lane.b32.xlu0 %v408, 32
        %v581 = vpop.permute.xlu0 %580
        %v583 = vmul.f32 %v577, %v581
        %585 = vrot.lane.b32.xlu0 %v578, 64
        %v586 = vpop.permute.xlu0 %585
        %v588 = vmul.f32 %v577, %v586
        %590 = vrot.lane.b32.xlu0 %v588, 32
        %v591 = vpop.permute.xlu0 %590
        %v593 = vadd.f32 %v583, %v591
        %v594 = vtanh.pop %v593
        %596 = vrot.lane.b32.xlu0 %v594, 64
        %v597 = vpop.permute.xlu0 %596
        %v599 = vmul.f32 %v577, %v597
        %601 = vset.pattern.permute.xlu0 0
        %602 = vperm.xlu0 %601, %v406
        %v603 = vpop.permute.xlu0 %602
        %v605 = vmul.f32 %v603, %v593
        %v606 = vsub.f32 1.0, %v406
        %608 = vset.pattern.permute.xlu0 0
        %609 = vperm.xlu0 %608, %v606
        %v610 = vpop.permute.xlu0 %609
        %v612 = vmul.f32 %v610, %v408
        %614 = vrot.lane.b32.xlu0 %v612, 32
        %v615 = vpop.permute.xlu0 %614
        %v617 = vadd.f32 %v605, %v615
        %619 = vrot.lane.b32.xlu0 %v617, 96
        %v620 = vpop.permute.xlu0 %619
        %vm622 = vcmask 254976
        %623 = vst.msk [vmem:[#allocation3] sm:$0x3] %vm622, %v620
        %v624 = vmul.f32 %v603, %v599
        %v625 = vmul.f32 %v610, %v407
        %627 = vrot.lane.b32.xlu0 %v625, 96
        %v628 = vpop.permute.xlu0 %627
        %v630 = vadd.f32 %v624, %v628
        %632 = vrot.lane.b32.xlu0 %v630, 32
        %v633 = vpop.permute.xlu0 %632
        %635 = vst.msk [vmem:[#allocation2] sm:$0x3] %vm622, %v633
        %637 = vrot.lane.b32.xlu0 %v624, 32
        %v638 = vpop.permute.xlu0 %637
        %640 = vst.msk [vmem:[%s393] sm:$0x3] %vm622, %v638
        %p641 = scmp.eq.s32.totalorder %s35, 7
        // Predicated region
        $region65: #{tpu_custom_call.1} parent=39 // pred_check
          %p642 = pneg %p641
        $region66: #{tpu_custom_call.1} parent=39 // pred_check_branch
          %644 = sbr.rel (%p642) target = $region68
        $region67: #{tpu_custom_call.1} parent=39 // pred_region
          %v645 = vld [vmem:[#allocation2] sm:$0x3]
          %646 = vst.msk [vmem:[#allocation14] sm:$0x3] %vm622, %v645
          %v647 = vld [vmem:[#allocation3] sm:$0x3]
          %648 = vst.msk [vmem:[#allocation16] sm:$0x3] %vm622, %v647
        $region68: #{tpu_custom_call.1} parent=39 // pred_fallthru
          _
        %s649 = sand.u32 %s171, 1
        %s650 = scalar_lea.sflag [#allocation6], %s649
        %s651 = sand.u32 %s171, 1
        %s652 = smul.addr %s651, 2
        %s653 = scalar_lea.vmem [#allocation13], %s652
        // Predicated region
        $region69: #{tpu_custom_call.1} parent=39 // pred_check
          %p654 = pneg %p181
        $region70: #{tpu_custom_call.1} parent=39 // pred_check_branch
          %656 = sbr.rel (%p654) target = $region72
        $region71: #{tpu_custom_call.1} parent=39 // pred_region
          %s658 = ssub.s32 32, 32
          %659 = vsyncadd %s650, %s658
          %s660 = sadd.s32 %s34, %s35
          %s661 = smul.addr %s660, 32
          %s662 = scalar_lea.hbm %s5, %s661
          %s664 = sshll.u32 %s653, 4
          %s665 = int_to_ptr.vmem [resolvable:$true] %s664
          %667 = dma.vmem_to_hbm [thread:$0]  %s665, 32, %s662, %s650
        $region72: #{tpu_custom_call.1} parent=39 // pred_fallthru
          _
        // Predicated region
        $region73: #{tpu_custom_call.1} parent=39 // pred_check
          %p668 = pneg %p207
        $region74: #{tpu_custom_call.1} parent=39 // pred_check_branch
          %670 = sbr.rel (%p668) target = $region76
        $region75: #{tpu_custom_call.1} parent=39 // pred_region
          %s672 = ssub.s32 32, 32
          %673 = vsyncadd [#allocation15], %s672
          %s674 = smul.addr %s34, 32
          %s675 = scalar_lea.hbm %s6, %s674
          %s677 = sshll.u32 [#allocation14], 4
          %s678 = int_to_ptr.vmem [resolvable:$true] %s677
          %680 = dma.vmem_to_hbm [thread:$0]  %s678, 32, %s675, [#allocation15]
        $region76: #{tpu_custom_call.1} parent=39 // pred_fallthru
          _
        // Predicated region
        $region77: #{tpu_custom_call.1} parent=39 // pred_check
          %p681 = pneg %p233
        $region78: #{tpu_custom_call.1} parent=39 // pred_check_branch
          %683 = sbr.rel (%p681) target = $region80
        $region79: #{tpu_custom_call.1} parent=39 // pred_region
          %s685 = ssub.s32 32, 32
          %686 = vsyncadd [#allocation15], %s685
          %s687 = smul.addr %s34, 32
          %s688 = scalar_lea.hbm %s7, %s687
          %s690 = sshll.u32 [#allocation16], 4
          %s691 = int_to_ptr.vmem [resolvable:$true] %s690
          %693 = dma.vmem_to_hbm [thread:$0]  %s691, 32, %s688, [#allocation15]
        $region80: #{tpu_custom_call.1} parent=39 // pred_fallthru
          _
        // Predicated region
        $region81: #{tpu_custom_call.1} parent=39 // pred_check
          %p694 = pneg %p207
        $region82: #{tpu_custom_call.1} parent=39 // pred_check_branch
          %696 = sbr.rel (%p694) target = $region84
        $region83: #{tpu_custom_call.1} parent=39 // pred_region
          %697 = dma.done [#allocation15], 32
        $region84: #{tpu_custom_call.1} parent=39 // pred_fallthru
          _
        // Predicated region
        $region85: #{tpu_custom_call.1} parent=39 // pred_check
          %p698 = pneg %p233
        $region86: #{tpu_custom_call.1} parent=39 // pred_check_branch
          %700 = sbr.rel (%p698) target = $region88
        $region87: #{tpu_custom_call.1} parent=39 // pred_region
          %701 = dma.done [#allocation15], 32
        $region88: #{tpu_custom_call.1} parent=39 // pred_fallthru
          _
      $region40: #{tpu_custom_call.1} parent=5 // pred_fallthru
        _
      %p702 = scmp.le.s32.totalorder 2, %s25
      // Predicated region
      $region89: #{tpu_custom_call.1} parent=5 // pred_check
        %p703 = pneg %p702
      $region90: #{tpu_custom_call.1} parent=5 // pred_check_branch
        %705 = sbr.rel (%p703) target = $region92
      $region91: #{tpu_custom_call.1} parent=5 // pred_region
        %s706 = ssub.s32 %s25, 2
        // Predicated region
        $region93: #{tpu_custom_call.1} parent=91 // pred_check
          %p707 = pneg %p187
        $region94: #{tpu_custom_call.1} parent=91 // pred_check_branch
          %709 = sbr.rel (%p707) target = $region96
        $region95: #{tpu_custom_call.1} parent=91 // pred_region
          %s710 = sand.u32 %s172, 1
          %s711 = scalar_lea.sflag [#allocation6], %s710
          %s712 = sand.u32 %s172, 1
          %s713 = smul.addr %s712, 2
          %s714 = scalar_lea.vmem [#allocation13], %s713
          %715 = dma.done %s711, 32
        $region96: #{tpu_custom_call.1} parent=91 // pred_fallthru
          _
      $region92: #{tpu_custom_call.1} parent=5 // pred_fallthru
        _
    $region6: #{tpu_custom_call.1} parent=1 // loop_footer
      %s29 = sadd.s32 1, %s25
    $region7: #{tpu_custom_call.1} parent=1 // loop_footer_branch
      %24 = sbr.rel target = $region3
    $region8: #{tpu_custom_call.1} parent=1 // loop_exit
      _
    %716 = vsyncpa [#allocation5], 1
    %s717 = scalar_lea.sflag [#allocation5], 1
    %718 = vsyncpa %s717, 1
    %719 = vsyncpa [#allocation8], 1
    %s720 = scalar_lea.sflag [#allocation8], 1
    %721 = vsyncpa %s720, 1
    %722 = vsyncpa [#allocation11], 1
    %723 = vsyncpa [#allocation6], 1
    %s724 = scalar_lea.sflag [#allocation6], 1
    %725 = vsyncpa %s724, 1
    %726 = vsyncpa [#allocation15], 1

</llo_original>
